<compile_context>
chip_gen: v5e
topology: v5e:2x2
jax: 0.10.0
libtpu: 0.0.40
codegen_flags: <defaults>
</compile_context>

<pallas_src>
import functools

import jax
import jax.numpy as jnp
from jax.experimental import pallas as pl
from jax.experimental.pallas import tpu as pltpu

EPS = 1e-12


def _round_up(x, m):
    return ((x + m - 1) // m) * m


def _cdsconv1d_kernel(x_ref, scale_ref, bias_ref, w_dw_ref, b_dw_ref,
                      w_fold_ref, b_fold_ref, out_ref, skip_ref,
                      *, kernel_size, stride, dilation, t_out, out_ch, eps):
    """One batch-block per grid step.  All hot-path compute lives here."""
    bb = x_ref.shape[0]
    c = x_ref.shape[2]
    t_pad = out_ref.shape[2]
    md = w_fold_ref.dtype                         # matmul operand dtype (pre-cast in wrapper)

    w_dw = w_dw_ref[...].astype(jnp.float32)      # (C, K)
    b_dw = b_dw_ref[...].astype(jnp.float32)      # (C, 1)
    w_fold = w_fold_ref[...]                      # (O+S, C): gamma pre-folded, matmul dtype
    b_fold = b_fold_ref[...]                      # (O+S, 1): W @ beta + b, f32

    inv_n = 1.0 / float(c * t_out)
    needs_mask = t_pad != t_out
    if needs_mask:
        valid = jax.lax.broadcasted_iota(jnp.int32, (c, t_pad), 1) < t_out

    for bi in range(bb):                          # static unroll over the batch block
        # ---- depthwise conv1d (groups=C): each tap is a contiguous slab of a parity plane.
        planes = {}
        y = None
        for k in range(kernel_size):
            p = (k * dilation) % stride           # parity plane index
            o = (k * dilation) // stride          # static lane offset inside the plane
            if p not in planes:
                planes[p] = x_ref[bi, p].astype(jnp.float32)        # (C, T_plane)
            tap = jax.lax.slice(planes[p], (0, o), (c, o + t_pad))  # (C, T_pad)
            contrib = tap * w_dw[:, k:k + 1]
            y = contrib if y is None else y + contrib
        y = y + b_dw

        # ---- FiLM conditioning: per-batch, per-channel affine.
        y = scale_ref[bi].astype(jnp.float32) * y + bias_ref[bi].astype(jnp.float32)

        # ---- zero padded lanes so the gLN stats / matmul only see the valid T_out region.
        if needs_mask:
            y = jnp.where(valid, y, 0.0)

        # ---- gLN stats over (C, T_out): two-pass centered variance (no cancellation).
        mean = jnp.sum(y) * inv_n
        d = y - mean
        if needs_mask:
            d = jnp.where(valid, d, 0.0)
        var = jnp.sum(d * d) * inv_n
        inv_std = jax.lax.rsqrt(var + eps)

        # ---- fused out/skip pointwise 1x1 convs: gamma is folded into the weights, so the
        #      normalization reduces to a per-batch scalar affine on the matmul result.
        #      W @ (gamma * d * inv_std + beta) + b == inv_std * (W*gamma) @ d + (W @ beta + b)
        z = jnp.dot(w_fold, d.astype(md), preferred_element_type=jnp.float32)
        z = z * inv_std + b_fold                  # (O+S, T_pad)

        out_ref[bi] = z[:out_ch].astype(out_ref.dtype)
        skip_ref[bi] = z[out_ch:].astype(skip_ref.dtype)


def conditioned_dsconv1d(x, scale, bias, params, *,
                         kernel_size=3, stride=2, dilation=1, eps=EPS,
                         matmul_dtype=jnp.bfloat16, batch_block=None):
    B, C, T = x.shape
    t_out = (T - dilation * (kernel_size - 1) - 1) // stride + 1
    t_pad = _round_up(t_out, 128)                       # lane-dense output stores
    max_off = ((kernel_size - 1) * dilation) // stride  # largest in-plane tap lane offset
    t_plane = _round_up(max(t_pad + max_off, -(-T // stride)), 128)
    out_ch = params["w_out"].shape[0]
    skip_ch = params["w_skip"].shape[0]

    if batch_block is None:
        batch_block = next(d for d in (8, 4, 2, 1) if B % d == 0)
    bb = batch_block
    assert B % bb == 0, "batch_block must divide the batch size"

    # ---- layout plumbing on the XLA side ------------------------------------
    # Stride-parity de-interleave (single pass over x, ~1x input HBM traffic):
    #   x_planes[b, p, c, j] = x[b, c, p + stride * j]
    # Tap k of the depthwise conv reads plane (k*dil) % stride at lane offset (k*dil) // stride.
    x_pad = jnp.pad(x, ((0, 0), (0, 0), (0, stride * t_plane - T)))
    x_planes = x_pad.reshape(B, C, t_plane, stride).transpose(0, 3, 1, 2)
    x_planes = x_planes.astype(matmul_dtype)            # halves input DMA on the bf16 path

    scale3 = scale[:, :, None].astype(jnp.float32)
    bias3 = bias[:, :, None].astype(jnp.float32)

    # Fuse the two pointwise convs and fold gLN gamma/beta into them (f32 fold, then pre-cast).
    w_cat = jnp.concatenate([params["w_out"], params["w_skip"]], axis=0).astype(jnp.float32)
    b_cat = jnp.concatenate([params["b_out"], params["b_skip"]], axis=0).astype(jnp.float32)
    gamma = params["gamma"].astype(jnp.float32)          # (C, 1)
    beta = params["beta"].astype(jnp.float32)            # (C, 1)
    w_fold = (w_cat * gamma[:, 0][None, :]).astype(matmul_dtype)   # (O+S, C), pre-cast
    b_fold = w_cat @ beta + b_cat                                  # (O+S, 1), f32

    kernel = functools.partial(
        _cdsconv1d_kernel, kernel_size=kernel_size, stride=stride, dilation=dilation,
        t_out=t_out, out_ch=out_ch, eps=eps)

    def bcast(shape):
        n = len(shape)
        return pl.BlockSpec(shape, lambda g, n=n: (0,) * n)

    # TODO(synk): for production shapes (C=512, T_out~8k) add a time grid axis ("arbitrary")
    #   with a 1-lane receptive-field halo and Welford/shifted gLN stats carried in scratch,
    #   normalize+matmul on a persisted bf16 y scratch in a second time pass, and set
    #   vmem_limit_bytes per chip (v5e 16 MiB scoped default, v7x 64 MiB physical).
    # TODO(synk): single-buffer the grid-invariant weight blocks (pipeline_mode=pl.Buffered(1))
    #   once confirmed supported on this pallas_call pipelining path; frees VMEM headroom (v7x).
    grid_spec = pltpu.PrefetchScalarGridSpec(
        num_scalar_prefetch=0,
        grid=(B // bb,),
        in_specs=[
            pl.BlockSpec((bb, stride, C, t_plane), lambda g: (g, 0, 0, 0)),  # x parity planes
            pl.BlockSpec((bb, C, 1), lambda g: (g, 0, 0)),                   # FiLM scale
            pl.BlockSpec((bb, C, 1), lambda g: (g, 0, 0)),                   # FiLM bias
            bcast((C, kernel_size)),                                         # depthwise W
            bcast((C, 1)),                                                   # depthwise b
            bcast((out_ch + skip_ch, C)),                                    # folded pointwise W
            bcast((out_ch + skip_ch, 1)),                                    # folded pointwise b
        ],
        out_specs=[
            pl.BlockSpec((bb, out_ch, t_pad), lambda g: (g, 0, 0)),
            pl.BlockSpec((bb, skip_ch, t_pad), lambda g: (g, 0, 0)),
        ],
    )

    out_p, skip_p = pl.pallas_call(
        kernel,
        out_shape=(jax.ShapeDtypeStruct((B, out_ch, t_pad), x.dtype),
                   jax.ShapeDtypeStruct((B, skip_ch, t_pad), x.dtype)),
        grid_spec=grid_spec,
        compiler_params=pltpu.CompilerParams(
            dimension_semantics=("parallel",)),   # batch blocks are fully independent
    )(x_planes, scale3, bias3, params["w_dw"], params["b_dw"], w_fold, b_fold)

    # Padded output lanes only ever contain the folded bias (benign); drop them here.
    return out_p[:, :, :t_out], skip_p[:, :, :t_out]


def reference(x, scale, bias, p, *, kernel_size, stride, dilation, eps):
    """Pure-JAX reference mirroring the PyTorch forward (all f32)."""
    B, C, T = x.shape
    t_out = (T - dilation * (kernel_size - 1) - 1) // stride + 1
    y = jnp.zeros((B, C, t_out), jnp.float32)
    for k in range(kernel_size):
        seg = jax.lax.slice(
            x, (0, 0, k * dilation),
            (B, C, k * dilation + stride * (t_out - 1) + 1),
            (1, 1, stride))
        y = y + seg * p["w_dw"][None, :, k:k + 1]
    y = y + p["b_dw"][None]
    y = scale[:, :, None] * y + bias[:, :, None]
    mean = jnp.mean(y, axis=(1, 2), keepdims=True)
    var = jnp.mean((y - mean) ** 2, axis=(1, 2), keepdims=True)
    y = p["gamma"][None] * (y - mean) / jnp.sqrt(var + eps) + p["beta"][None]
    out = jnp.einsum("oc,bct->bot", p["w_out"], y) + p["b_out"][None]
    skip = jnp.einsum("oc,bct->bot", p["w_skip"], y) + p["b_skip"][None]
    return out, skip


if __name__ == "__main__":
    key = jax.random.PRNGKey(0)
    B, C, T = 2, 16, 33
    OUT_CH, SKIP_CH = 32, 32
    K, STRIDE, DIL = 3, 2, 1

    ks = jax.random.split(key, 11)
    x = jax.random.normal(ks[0], (B, C, T), jnp.float32)
    scale = jax.random.normal(ks[1], (B, C), jnp.float32)
    bias = jax.random.normal(ks[2], (B, C), jnp.float32)

    # Deterministic synthetic parameters (shapes from the module __init__):
    #   depthwise Conv1d(C, C, K, groups=C): weight (C, 1, K) -> stored (C, K), bias (C,)
    #   gLN: gamma/beta (1, C, 1) -> stored (C, 1)  (non-trivial to exercise the fold)
    #   pointwise Conv1d(C, out/skip, 1): weight (out, C, 1) -> stored (out, C), bias (out,)
    params = {
        "w_dw": 0.3 * jax.random.normal(ks[3], (C, K), jnp.float32),
        "b_dw": 0.1 * jax.random.normal(ks[4], (C, 1), jnp.float32),
        "gamma": 1.0 + 0.1 * jax.random.normal(ks[9], (C, 1), jnp.float32),
        "beta": 0.1 * jax.random.normal(ks[10], (C, 1), jnp.float32),
        "w_out": 0.2 * jax.random.normal(ks[5], (OUT_CH, C), jnp.float32),
        "b_out": 0.1 * jax.random.normal(ks[6], (OUT_CH, 1), jnp.float32),
        "w_skip": 0.2 * jax.random.normal(ks[7], (SKIP_CH, C), jnp.float32),
        "b_skip": 0.1 * jax.random.normal(ks[8], (SKIP_CH, 1), jnp.float32),
    }

    ref_out, ref_skip = reference(
        x, scale, bias, params, kernel_size=K, stride=STRIDE, dilation=DIL, eps=EPS)

    # f32 MXU path: tight tolerance against the f32 reference (validation path).
    out32, skip32 = conditioned_dsconv1d(
        x, scale, bias, params, kernel_size=K, stride=STRIDE, dilation=DIL,
        eps=EPS, matmul_dtype=jnp.float32)
    jax.block_until_ready((out32, skip32))
    assert jnp.allclose(out32, ref_out, rtol=1e-3, atol=1e-3), "f32 output mismatch"
    assert jnp.allclose(skip32, ref_skip, rtol=1e-3, atol=1e-3), "f32 skip mismatch"

    # bf16-operand MXU path (default, per perf feedback): looser tolerance.
    out, skip = conditioned_dsconv1d(
        x, scale, bias, params, kernel_size=K, stride=STRIDE, dilation=DIL, eps=EPS)
    jax.block_until_ready((out, skip))
    assert jnp.allclose(out, ref_out, rtol=5e-2, atol=5e-2), "bf16 output mismatch"
    assert jnp.allclose(skip, ref_skip, rtol=5e-2, atol=5e-2), "bf16 skip mismatch"

    print("KERNEL_OK")
</pallas_src>

<mosaic_0001>
module attributes {stable_mosaic.version = 11 : i64} {
  func.func @_cdsconv1d_kernel(%arg0: i32, %arg1: memref<2x2x16x256xf32, #tpu.memory_space<vmem>>, %arg2: memref<2x16x1xf32, #tpu.memory_space<vmem>>, %arg3: memref<2x16x1xf32, #tpu.memory_space<vmem>>, %arg4: memref<16x3xf32, #tpu.memory_space<vmem>>, %arg5: memref<16x1xf32, #tpu.memory_space<vmem>>, %arg6: memref<64x16xf32, #tpu.memory_space<vmem>>, %arg7: memref<64x1xf32, #tpu.memory_space<vmem>>, %arg8: memref<2x32x128xf32, #tpu.memory_space<vmem>>, %arg9: memref<2x32x128xf32, #tpu.memory_space<vmem>>) attributes {dimension_semantics = [#tpu.dimension_semantics<parallel>], iteration_bounds = array<i64: 1>, scalar_prefetch = 0 : i64, scratch_operands = 0 : i64, tpu.core_type = #tpu.core_type<tc>, window_params = [{transform_indices = @transform_0, window_bounds = array<i64: 2, 2, 16, 256>}, {transform_indices = @transform_1, window_bounds = array<i64: 2, 16, 1>}, {transform_indices = @transform_2, window_bounds = array<i64: 2, 16, 1>}, {pipeline_mode = #tpu.pipeline_mode<synchronous>, transform_indices = @transform_3, window_bounds = array<i64: 16, 3>}, {pipeline_mode = #tpu.pipeline_mode<synchronous>, transform_indices = @transform_4, window_bounds = array<i64: 16, 1>}, {pipeline_mode = #tpu.pipeline_mode<synchronous>, transform_indices = @transform_5, window_bounds = array<i64: 64, 16>}, {pipeline_mode = #tpu.pipeline_mode<synchronous>, transform_indices = @transform_6, window_bounds = array<i64: 64, 1>}, {transform_indices = @transform_7, window_bounds = array<i64: 2, 32, 128>}, {transform_indices = @transform_8, window_bounds = array<i64: 2, 32, 128>}]} {
    %c0 = arith.constant 0 : index
    %c0_0 = arith.constant 0 : index
    %0 = vector.load %arg4[%c0, %c0_0] : memref<16x3xf32, #tpu.memory_space<vmem>>, vector<16x3xf32>
    %c0_1 = arith.constant 0 : index
    %c0_2 = arith.constant 0 : index
    %1 = vector.load %arg5[%c0_1, %c0_2] : memref<16x1xf32, #tpu.memory_space<vmem>>, vector<16x1xf32>
    %c0_3 = arith.constant 0 : index
    %c0_4 = arith.constant 0 : index
    %2 = vector.load %arg6[%c0_3, %c0_4] : memref<64x16xf32, #tpu.memory_space<vmem>>, vector<64x16xf32>
    %c0_5 = arith.constant 0 : index
    %c0_6 = arith.constant 0 : index
    %3 = vector.load %arg7[%c0_5, %c0_6] : memref<64x1xf32, #tpu.memory_space<vmem>>, vector<64x1xf32>
    %4 = tpu.iota {dimensions = array<i32: 1>} : vector<16x128xi32>
    %c16_i32 = arith.constant 16 : i32
    %5 = vector.broadcast %c16_i32 : i32 to vector<16x128xi32>
    %6 = arith.cmpi slt, %4, %5 : vector<16x128xi32>
    %c0_7 = arith.constant 0 : index
    %c0_8 = arith.constant 0 : index
    %c0_9 = arith.constant 0 : index
    %c0_10 = arith.constant 0 : index
    %7 = vector.load %arg1[%c0_7, %c0_8, %c0_9, %c0_10] : memref<2x2x16x256xf32, #tpu.memory_space<vmem>>, vector<1x1x16x256xf32>
    %8 = vector.shape_cast %7 : vector<1x1x16x256xf32> to vector<16x256xf32>
    %9 = vector.extract_strided_slice %8 {offsets = [0, 0], sizes = [16, 128], strides = [1, 1]} : vector<16x256xf32> to vector<16x128xf32>
    %10 = vector.extract_strided_slice %0 {offsets = [0, 0], sizes = [16, 1], strides = [1, 1]} : vector<16x3xf32> to vector<16x1xf32>
    %11 = vector.broadcast %10 : vector<16x1xf32> to vector<16x128xf32>
    %12 = arith.mulf %9, %11 : vector<16x128xf32>
    %c0_11 = arith.constant 0 : index
    %c1 = arith.constant 1 : index
    %c0_12 = arith.constant 0 : index
    %c0_13 = arith.constant 0 : index
    %13 = vector.load %arg1[%c0_11, %c1, %c0_12, %c0_13] : memref<2x2x16x256xf32, #tpu.memory_space<vmem>>, vector<1x1x16x256xf32>
    %14 = vector.shape_cast %13 : vector<1x1x16x256xf32> to vector<16x256xf32>
    %15 = vector.extract_strided_slice %14 {offsets = [0, 0], sizes = [16, 128], strides = [1, 1]} : vector<16x256xf32> to vector<16x128xf32>
    %16 = vector.extract_strided_slice %0 {offsets = [0, 1], sizes = [16, 1], strides = [1, 1]} : vector<16x3xf32> to vector<16x1xf32>
    %17 = vector.broadcast %16 : vector<16x1xf32> to vector<16x128xf32>
    %18 = arith.mulf %15, %17 : vector<16x128xf32>
    %19 = arith.addf %12, %18 : vector<16x128xf32>
    %20 = vector.extract_strided_slice %8 {offsets = [0, 1], sizes = [16, 128], strides = [1, 1]} : vector<16x256xf32> to vector<16x128xf32>
    %21 = vector.extract_strided_slice %0 {offsets = [0, 2], sizes = [16, 1], strides = [1, 1]} : vector<16x3xf32> to vector<16x1xf32>
    %22 = vector.broadcast %21 : vector<16x1xf32> to vector<16x128xf32>
    %23 = arith.mulf %20, %22 : vector<16x128xf32>
    %24 = arith.addf %19, %23 : vector<16x128xf32>
    %25 = vector.broadcast %1 : vector<16x1xf32> to vector<16x128xf32>
    %26 = arith.addf %24, %25 : vector<16x128xf32>
    %c0_14 = arith.constant 0 : index
    %c0_15 = arith.constant 0 : index
    %c0_16 = arith.constant 0 : index
    %27 = vector.load %arg2[%c0_14, %c0_15, %c0_16] : memref<2x16x1xf32, #tpu.memory_space<vmem>>, vector<1x16x1xf32>
    %28 = vector.shape_cast %27 : vector<1x16x1xf32> to vector<16x1xf32>
    %29 = vector.broadcast %28 : vector<16x1xf32> to vector<16x128xf32>
    %30 = arith.mulf %29, %26 : vector<16x128xf32>
    %c0_17 = arith.constant 0 : index
    %c0_18 = arith.constant 0 : index
    %c0_19 = arith.constant 0 : index
    %31 = vector.load %arg3[%c0_17, %c0_18, %c0_19] : memref<2x16x1xf32, #tpu.memory_space<vmem>>, vector<1x16x1xf32>
    %32 = vector.shape_cast %31 : vector<1x16x1xf32> to vector<16x1xf32>
    %33 = vector.broadcast %32 : vector<16x1xf32> to vector<16x128xf32>
    %34 = arith.addf %30, %33 : vector<16x128xf32>
    %cst = arith.constant 0.000000e+00 : f32
    %35 = vector.broadcast %cst : f32 to vector<16x128xf32>
    %36 = arith.select %6, %34, %35 : vector<16x128xi1>, vector<16x128xf32>
    %37 = vector.shape_cast %36 : vector<16x128xf32> to vector<1x16x128xf32>
    %cst_20 = arith.constant dense<0.000000e+00> : vector<1xf32>
    %38 = vector.multi_reduction <add>, %37, %cst_20 [1, 2] : vector<1x16x128xf32> to vector<1xf32>
    %39 = vector.shape_cast %38 : vector<1xf32> to vector<1x1x1xf32>
    %40 = vector.extract %39[0, 0, 0] : f32 from vector<1x1x1xf32>
    %cst_21 = arith.constant 3.906250e-03 : f32
    %41 = arith.mulf %40, %cst_21 : f32
    %42 = vector.broadcast %41 : f32 to vector<16x128xf32>
    %43 = arith.subf %36, %42 : vector<16x128xf32>
    %cst_22 = arith.constant 0.000000e+00 : f32
    %44 = vector.broadcast %cst_22 : f32 to vector<16x128xf32>
    %45 = arith.select %6, %43, %44 : vector<16x128xi1>, vector<16x128xf32>
    %46 = arith.mulf %45, %45 : vector<16x128xf32>
    %47 = vector.shape_cast %46 : vector<16x128xf32> to vector<1x16x128xf32>
    %cst_23 = arith.constant dense<0.000000e+00> : vector<1xf32>
    %48 = vector.multi_reduction <add>, %47, %cst_23 [1, 2] : vector<1x16x128xf32> to vector<1xf32>
    %49 = vector.shape_cast %48 : vector<1xf32> to vector<1x1x1xf32>
    %50 = vector.extract %49[0, 0, 0] : f32 from vector<1x1x1xf32>
    %cst_24 = arith.constant 3.906250e-03 : f32
    %51 = arith.mulf %50, %cst_24 : f32
    %cst_25 = arith.constant 9.99999996E-13 : f32
    %52 = arith.addf %51, %cst_25 : f32
    %53 = math.rsqrt %52 : f32
    %cst_26 = arith.constant dense<0.000000e+00> : vector<64x128xf32>
    %54 = tpu.matmul %2, %45, %cst_26 {dimension_numbers = #tpu.dot_dimension_numbers<[1], [0], [0], [1], [0, 0, 1, 1], [], []>} : vector<64x16xf32>, vector<16x128xf32>, vector<64x128xf32> -> vector<64x128xf32>
    %55 = vector.broadcast %53 : f32 to vector<64x128xf32>
    %56 = arith.mulf %54, %55 : vector<64x128xf32>
    %57 = vector.broadcast %3 : vector<64x1xf32> to vector<64x128xf32>
    %58 = arith.addf %56, %57 : vector<64x128xf32>
    %59 = vector.extract_strided_slice %58 {offsets = [0, 0], sizes = [32, 128], strides = [1, 1]} : vector<64x128xf32> to vector<32x128xf32>
    %c0_27 = arith.constant 0 : index
    %c0_28 = arith.constant 0 : index
    %c0_29 = arith.constant 0 : index
    %60 = vector.load %arg8[%c0_27, %c0_28, %c0_29] : memref<2x32x128xf32, #tpu.memory_space<vmem>>, vector<1x32x128xf32>
    %61 = vector.shape_cast %60 : vector<1x32x128xf32> to vector<32x128xf32>
    %62 = vector.shape_cast %59 : vector<32x128xf32> to vector<1x32x128xf32>
    tpu.vector_store %arg8[%c0_27, %c0_28, %c0_29], %62 {strides = array<i32>} : memref<2x32x128xf32, #tpu.memory_space<vmem>>, vector<1x32x128xf32>,
    %63 = vector.extract_strided_slice %58 {offsets = [32, 0], sizes = [32, 128], strides = [1, 1]} : vector<64x128xf32> to vector<32x128xf32>
    %c0_30 = arith.constant 0 : index
    %c0_31 = arith.constant 0 : index
    %c0_32 = arith.constant 0 : index
    %64 = vector.load %arg9[%c0_30, %c0_31, %c0_32] : memref<2x32x128xf32, #tpu.memory_space<vmem>>, vector<1x32x128xf32>
    %65 = vector.shape_cast %64 : vector<1x32x128xf32> to vector<32x128xf32>
    %66 = vector.shape_cast %63 : vector<32x128xf32> to vector<1x32x128xf32>
    tpu.vector_store %arg9[%c0_30, %c0_31, %c0_32], %66 {strides = array<i32>} : memref<2x32x128xf32, #tpu.memory_space<vmem>>, vector<1x32x128xf32>,
    %c1_33 = arith.constant 1 : index
    %c0_34 = arith.constant 0 : index
    %c0_35 = arith.constant 0 : index
    %c0_36 = arith.constant 0 : index
    %67 = vector.load %arg1[%c1_33, %c0_34, %c0_35, %c0_36] : memref<2x2x16x256xf32, #tpu.memory_space<vmem>>, vector<1x1x16x256xf32>
    %68 = vector.shape_cast %67 : vector<1x1x16x256xf32> to vector<16x256xf32>
    %69 = vector.extract_strided_slice %68 {offsets = [0, 0], sizes = [16, 128], strides = [1, 1]} : vector<16x256xf32> to vector<16x128xf32>
    %70 = vector.extract_strided_slice %0 {offsets = [0, 0], sizes = [16, 1], strides = [1, 1]} : vector<16x3xf32> to vector<16x1xf32>
    %71 = vector.broadcast %70 : vector<16x1xf32> to vector<16x128xf32>
    %72 = arith.mulf %69, %71 : vector<16x128xf32>
    %c1_37 = arith.constant 1 : index
    %c1_38 = arith.constant 1 : index
    %c0_39 = arith.constant 0 : index
    %c0_40 = arith.constant 0 : index
    %73 = vector.load %arg1[%c1_37, %c1_38, %c0_39, %c0_40] : memref<2x2x16x256xf32, #tpu.memory_space<vmem>>, vector<1x1x16x256xf32>
    %74 = vector.shape_cast %73 : vector<1x1x16x256xf32> to vector<16x256xf32>
    %75 = vector.extract_strided_slice %74 {offsets = [0, 0], sizes = [16, 128], strides = [1, 1]} : vector<16x256xf32> to vector<16x128xf32>
    %76 = vector.extract_strided_slice %0 {offsets = [0, 1], sizes = [16, 1], strides = [1, 1]} : vector<16x3xf32> to vector<16x1xf32>
    %77 = vector.broadcast %76 : vector<16x1xf32> to vector<16x128xf32>
    %78 = arith.mulf %75, %77 : vector<16x128xf32>
    %79 = arith.addf %72, %78 : vector<16x128xf32>
    %80 = vector.extract_strided_slice %68 {offsets = [0, 1], sizes = [16, 128], strides = [1, 1]} : vector<16x256xf32> to vector<16x128xf32>
    %81 = vector.extract_strided_slice %0 {offsets = [0, 2], sizes = [16, 1], strides = [1, 1]} : vector<16x3xf32> to vector<16x1xf32>
    %82 = vector.broadcast %81 : vector<16x1xf32> to vector<16x128xf32>
    %83 = arith.mulf %80, %82 : vector<16x128xf32>
    %84 = arith.addf %79, %83 : vector<16x128xf32>
    %85 = vector.broadcast %1 : vector<16x1xf32> to vector<16x128xf32>
    %86 = arith.addf %84, %85 : vector<16x128xf32>
    %c1_41 = arith.constant 1 : index
    %c0_42 = arith.constant 0 : index
    %c0_43 = arith.constant 0 : index
    %87 = vector.load %arg2[%c1_41, %c0_42, %c0_43] : memref<2x16x1xf32, #tpu.memory_space<vmem>>, vector<1x16x1xf32>
    %88 = vector.shape_cast %87 : vector<1x16x1xf32> to vector<16x1xf32>
    %89 = vector.broadcast %88 : vector<16x1xf32> to vector<16x128xf32>
    %90 = arith.mulf %89, %86 : vector<16x128xf32>
    %c1_44 = arith.constant 1 : index
    %c0_45 = arith.constant 0 : index
    %c0_46 = arith.constant 0 : index
    %91 = vector.load %arg3[%c1_44, %c0_45, %c0_46] : memref<2x16x1xf32, #tpu.memory_space<vmem>>, vector<1x16x1xf32>
    %92 = vector.shape_cast %91 : vector<1x16x1xf32> to vector<16x1xf32>
    %93 = vector.broadcast %92 : vector<16x1xf32> to vector<16x128xf32>
    %94 = arith.addf %90, %93 : vector<16x128xf32>
    %cst_47 = arith.constant 0.000000e+00 : f32
    %95 = vector.broadcast %cst_47 : f32 to vector<16x128xf32>
    %96 = arith.select %6, %94, %95 : vector<16x128xi1>, vector<16x128xf32>
    %97 = vector.shape_cast %96 : vector<16x128xf32> to vector<1x16x128xf32>
    %cst_48 = arith.constant dense<0.000000e+00> : vector<1xf32>
    %98 = vector.multi_reduction <add>, %97, %cst_48 [1, 2] : vector<1x16x128xf32> to vector<1xf32>
    %99 = vector.shape_cast %98 : vector<1xf32> to vector<1x1x1xf32>
    %100 = vector.extract %99[0, 0, 0] : f32 from vector<1x1x1xf32>
    %cst_49 = arith.constant 3.906250e-03 : f32
    %101 = arith.mulf %100, %cst_49 : f32
    %102 = vector.broadcast %101 : f32 to vector<16x128xf32>
    %103 = arith.subf %96, %102 : vector<16x128xf32>
    %cst_50 = arith.constant 0.000000e+00 : f32
    %104 = vector.broadcast %cst_50 : f32 to vector<16x128xf32>
    %105 = arith.select %6, %103, %104 : vector<16x128xi1>, vector<16x128xf32>
    %106 = arith.mulf %105, %105 : vector<16x128xf32>
    %107 = vector.shape_cast %106 : vector<16x128xf32> to vector<1x16x128xf32>
    %cst_51 = arith.constant dense<0.000000e+00> : vector<1xf32>
    %108 = vector.multi_reduction <add>, %107, %cst_51 [1, 2] : vector<1x16x128xf32> to vector<1xf32>
    %109 = vector.shape_cast %108 : vector<1xf32> to vector<1x1x1xf32>
    %110 = vector.extract %109[0, 0, 0] : f32 from vector<1x1x1xf32>
    %cst_52 = arith.constant 3.906250e-03 : f32
    %111 = arith.mulf %110, %cst_52 : f32
    %cst_53 = arith.constant 9.99999996E-13 : f32
    %112 = arith.addf %111, %cst_53 : f32
    %113 = math.rsqrt %112 : f32
    %cst_54 = arith.constant dense<0.000000e+00> : vector<64x128xf32>
    %114 = tpu.matmul %2, %105, %cst_54 {dimension_numbers = #tpu.dot_dimension_numbers<[1], [0], [0], [1], [0, 0, 1, 1], [], []>} : vector<64x16xf32>, vector<16x128xf32>, vector<64x128xf32> -> vector<64x128xf32>
    %115 = vector.broadcast %113 : f32 to vector<64x128xf32>
    %116 = arith.mulf %114, %115 : vector<64x128xf32>
    %117 = vector.broadcast %3 : vector<64x1xf32> to vector<64x128xf32>
    %118 = arith.addf %116, %117 : vector<64x128xf32>
    %119 = vector.extract_strided_slice %118 {offsets = [0, 0], sizes = [32, 128], strides = [1, 1]} : vector<64x128xf32> to vector<32x128xf32>
    %c1_55 = arith.constant 1 : index
    %c0_56 = arith.constant 0 : index
    %c0_57 = arith.constant 0 : index
    %120 = vector.load %arg8[%c1_55, %c0_56, %c0_57] : memref<2x32x128xf32, #tpu.memory_space<vmem>>, vector<1x32x128xf32>
    %121 = vector.shape_cast %120 : vector<1x32x128xf32> to vector<32x128xf32>
    %122 = vector.shape_cast %119 : vector<32x128xf32> to vector<1x32x128xf32>
    tpu.vector_store %arg8[%c1_55, %c0_56, %c0_57], %122 {strides = array<i32>} : memref<2x32x128xf32, #tpu.memory_space<vmem>>, vector<1x32x128xf32>,
    %123 = vector.extract_strided_slice %118 {offsets = [32, 0], sizes = [32, 128], strides = [1, 1]} : vector<64x128xf32> to vector<32x128xf32>
    %c1_58 = arith.constant 1 : index
    %c0_59 = arith.constant 0 : index
    %c0_60 = arith.constant 0 : index
    %124 = vector.load %arg9[%c1_58, %c0_59, %c0_60] : memref<2x32x128xf32, #tpu.memory_space<vmem>>, vector<1x32x128xf32>
    %125 = vector.shape_cast %124 : vector<1x32x128xf32> to vector<32x128xf32>
    %126 = vector.shape_cast %123 : vector<32x128xf32> to vector<1x32x128xf32>
    tpu.vector_store %arg9[%c1_58, %c0_59, %c0_60], %126 {strides = array<i32>} : memref<2x32x128xf32, #tpu.memory_space<vmem>>, vector<1x32x128xf32>,
    return
  }
  func.func @transform_0(%arg0: i32) -> (i32, i32, i32, i32) {
    %c0_i32 = arith.constant 0 : i32
    %c0_i32_0 = arith.constant 0 : i32
    %c0_i32_1 = arith.constant 0 : i32
    %c0_i32_2 = arith.constant 0 : i32
    return %arg0, %c0_i32, %c0_i32_0, %c0_i32_1 : i32, i32, i32, i32
  }
  func.func @transform_1(%arg0: i32) -> (i32, i32, i32) {
    %c0_i32 = arith.constant 0 : i32
    %c0_i32_0 = arith.constant 0 : i32
    %c0_i32_1 = arith.constant 0 : i32
    return %arg0, %c0_i32, %c0_i32_0 : i32, i32, i32
  }
  func.func @transform_2(%arg0: i32) -> (i32, i32, i32) {
    %c0_i32 = arith.constant 0 : i32
    %c0_i32_0 = arith.constant 0 : i32
    %c0_i32_1 = arith.constant 0 : i32
    return %arg0, %c0_i32, %c0_i32_0 : i32, i32, i32
  }
  func.func @transform_3(%arg0: i32) -> (i32, i32) {
    %c0_i32 = arith.constant 0 : i32
    %c0_i32_0 = arith.constant 0 : i32
    %c0_i32_1 = arith.constant 0 : i32
    return %c0_i32, %c0_i32_0 : i32, i32
  }
  func.func @transform_4(%arg0: i32) -> (i32, i32) {
    %c0_i32 = arith.constant 0 : i32
    %c0_i32_0 = arith.constant 0 : i32
    %c0_i32_1 = arith.constant 0 : i32
    return %c0_i32, %c0_i32_0 : i32, i32
  }
  func.func @transform_5(%arg0: i32) -> (i32, i32) {
    %c0_i32 = arith.constant 0 : i32
    %c0_i32_0 = arith.constant 0 : i32
    %c0_i32_1 = arith.constant 0 : i32
    return %c0_i32, %c0_i32_0 : i32, i32
  }
  func.func @transform_6(%arg0: i32) -> (i32, i32) {
    %c0_i32 = arith.constant 0 : i32
    %c0_i32_0 = arith.constant 0 : i32
    %c0_i32_1 = arith.constant 0 : i32
    return %c0_i32, %c0_i32_0 : i32, i32
  }
  func.func @transform_7(%arg0: i32) -> (i32, i32, i32) {
    %c0_i32 = arith.constant 0 : i32
    %c0_i32_0 = arith.constant 0 : i32
    %c0_i32_1 = arith.constant 0 : i32
    return %arg0, %c0_i32, %c0_i32_0 : i32, i32, i32
  }
  func.func @transform_8(%arg0: i32) -> (i32, i32, i32) {
    %c0_i32 = arith.constant 0 : i32
    %c0_i32_0 = arith.constant 0 : i32
    %c0_i32_1 = arith.constant 0 : i32
    return %arg0, %c0_i32, %c0_i32_0 : i32, i32, i32
  }
}

</mosaic_0001>

<llo_original>
// kernel: tpu_custom_call.1
$region0: #{tpu_custom_call.1}
  #allocation0 [shape = 'u32[]', space=smem, size = 0x4, offset = 0x4, fixed_abs, tag = 'smem constant byte address 0x4 - core index']
  #allocation1 [shape = 'u32[72,128]{1,0:T(1,128)}', space=vmem, size = 0x9000, scoped, tag = 'internal scratch']
  %s0 = inlined_call_operand.vmem [shape: f32[2,2,16,256], index: 0, kind: input, shape index: {}]
  %s1 = inlined_call_operand.vmem [shape: f32[2,16,1], index: 1, kind: input, shape index: {}]
  %s2 = inlined_call_operand.vmem [shape: f32[2,16,1], index: 2, kind: input, shape index: {}]
  %s3 = inlined_call_operand.vmem [shape: f32[16,3], index: 3, kind: input, shape index: {}]
  %s4 = inlined_call_operand.vmem [shape: f32[16,1], index: 4, kind: input, shape index: {}]
  %s5 = inlined_call_operand.vmem [shape: f32[64,16], index: 5, kind: input, shape index: {}]
  %s6 = inlined_call_operand.vmem [shape: f32[64,1], index: 6, kind: input, shape index: {}]
  %s7 = inlined_call_operand.hbm [shape: f32[2,32,128], index: 7, kind: output, shape index: {0}]
  %s8 = inlined_call_operand.hbm [shape: f32[2,32,128], index: 8, kind: output, shape index: {1}]
  %9 = xla_tuple %s7, %s8
  %s10 = sld [smem:[#allocation0]]
  $region46: #{tpu_custom_call.1} parent=0
    _
  %s12 = ssub.s32 1, %s10
  %s13 = scalar_select 0, %s12, %s10
  $region1: #{tpu_custom_call.1} parent=0
    #allocation2 [shape = 'u8[32768]{0}', space=vmem, size = 0x8000, scoped, tag = 'output window, operand 0, single buffered']
    #allocation3 [shape = 's32[1]{0}', space=sflag, size = 0x4, scoped, tag = 'scoped memory for tpu_custom_call.1']
    #allocation4 [shape = 'u8[32768]{0}', space=vmem, size = 0x8000, scoped, tag = 'output window, operand 1, single buffered']
    #allocation5 [shape = 's32[1]{0}', space=sflag, size = 0x4, scoped, tag = 'scoped memory for tpu_custom_call.1']
    %14 = vsyncpa [#allocation3], 0
    %15 = vsyncpa [#allocation5], 0
    // Predicated region
    $region2: #{tpu_custom_call.1} parent=1 // pred_check
      _
    $region3: #{tpu_custom_call.1} parent=1 // pred_check_branch
      %17 = sbr.rel (0) target = $region5
    $region4: #{tpu_custom_call.1} parent=1 // pred_region
      _
    $region5: #{tpu_custom_call.1} parent=1 // pred_fallthru
      _
    // Predicated region
    $region6: #{tpu_custom_call.1} parent=1 // pred_check
      _
    $region7: #{tpu_custom_call.1} parent=1 // pred_check_branch
      %19 = sbr.rel (0) target = $region9
    $region8: #{tpu_custom_call.1} parent=1 // pred_region
      _
    $region9: #{tpu_custom_call.1} parent=1 // pred_fallthru
      _
    // Predicated region
    $region10: #{tpu_custom_call.1} parent=1 // pred_check
      _
    $region11: #{tpu_custom_call.1} parent=1 // pred_check_branch
      %21 = sbr.rel (0) target = $region13
    $region12: #{tpu_custom_call.1} parent=1 // pred_region
      _
    $region13: #{tpu_custom_call.1} parent=1 // pred_fallthru
      _
    // Predicated region
    $region14: #{tpu_custom_call.1} parent=1 // pred_check
      _
    $region15: #{tpu_custom_call.1} parent=1 // pred_check_branch
      %23 = sbr.rel (0) target = $region17
    $region16: #{tpu_custom_call.1} parent=1 // pred_region
      _
    $region17: #{tpu_custom_call.1} parent=1 // pred_fallthru
      _
    // Predicated region
    $region18: #{tpu_custom_call.1} parent=1 // pred_check
      _
    $region19: #{tpu_custom_call.1} parent=1 // pred_check_branch
      %25 = sbr.rel (0) target = $region21
    $region20: #{tpu_custom_call.1} parent=1 // pred_region
      _
    $region21: #{tpu_custom_call.1} parent=1 // pred_fallthru
      _
    // Predicated region
    $region22: #{tpu_custom_call.1} parent=1 // pred_check
      _
    $region23: #{tpu_custom_call.1} parent=1 // pred_check_branch
      %27 = sbr.rel (0) target = $region25
    $region24: #{tpu_custom_call.1} parent=1 // pred_region
      _
    $region25: #{tpu_custom_call.1} parent=1 // pred_fallthru
      _
    // Predicated region
    $region26: #{tpu_custom_call.1} parent=1 // pred_check
      _
    $region27: #{tpu_custom_call.1} parent=1 // pred_check_branch
      %29 = sbr.rel (0) target = $region29
    $region28: #{tpu_custom_call.1} parent=1 // pred_region
      _
    $region29: #{tpu_custom_call.1} parent=1 // pred_fallthru
      _
    %v30 = vld [vmem:[%s3] sm:$0xff]
    %v31 = vld [vmem:[%s3 + $0x8] sm:$0xff]
    %v32 = vld [vmem:[%s4] sm:$0xff]
    %v33 = vld [vmem:[%s4 + $0x8] sm:$0xff]
    %v34 = vld [vmem:[%s5] sm:$0xff]
    %v35 = vld [vmem:[%s5 + $0x8] sm:$0xff]
    %v36 = vld [vmem:[%s5 + $0x10] sm:$0xff]
    %v37 = vld [vmem:[%s5 + $0x18] sm:$0xff]
    %v38 = vld [vmem:[%s5 + $0x20] sm:$0xff]
    %v39 = vld [vmem:[%s5 + $0x28] sm:$0xff]
    %v40 = vld [vmem:[%s5 + $0x30] sm:$0xff]
    %v41 = vld [vmem:[%s5 + $0x38] sm:$0xff]
    %v42 = vld [vmem:[%s6] sm:$0xff]
    %v43 = vld [vmem:[%s6 + $0x8] sm:$0xff]
    %v44 = vld [vmem:[%s6 + $0x10] sm:$0xff]
    %v45 = vld [vmem:[%s6 + $0x18] sm:$0xff]
    %v46 = vld [vmem:[%s6 + $0x20] sm:$0xff]
    %v47 = vld [vmem:[%s6 + $0x28] sm:$0xff]
    %v48 = vld [vmem:[%s6 + $0x30] sm:$0xff]
    %v49 = vld [vmem:[%s6 + $0x38] sm:$0xff]
    %v50 = vlaneseq
    %v51 = vand.u32 %v50, 127
    %vm52 = vcmp.lt.s32.totalorder %v51, 16
    %v53 = vld [vmem:[%s0] sm:$0xff]
    %v54 = vld [vmem:[%s0 + $0x8] sm:$0xff]
    %v55 = vld [vmem:[%s0 + $0x10] sm:$0xff]
    %v56 = vld [vmem:[%s0 + $0x18] sm:$0xff]
    %58 = vset.pattern.permute.xlu0 0
    %59 = vperm.xlu0 %58, %v30
    %v60 = vpop.permute.xlu0 %59
    %63 = vset.pattern.permute.xlu0 0
    %64 = vperm.xlu0 %63, %v31
    %v65 = vpop.permute.xlu0 %64
    %v67 = vmul.f32 %v53, %v60
    %v68 = vmul.f32 %v55, %v65
    %s69 = scalar_lea.vmem %s0, 32
    %v70 = vld [vmem:[%s69] sm:$0xff]
    %v71 = vld [vmem:[%s69 + $0x10] sm:$0xff]
    %72 = vset.pattern.permute.xlu0 1
    %73 = vperm.xlu0 %72, %v30
    %v74 = vpop.permute.xlu0 %73
    %76 = vset.pattern.permute.xlu0 1
    %77 = vperm.xlu0 %76, %v31
    %v78 = vpop.permute.xlu0 %77
    %v80 = vmul.f32 %v70, %v74
    %v81 = vmul.f32 %v71, %v78
    %v82 = vadd.f32 %v67, %v80
    %v83 = vadd.f32 %v68, %v81
    %84 = vset.pattern.permute.xlu0 2
    %85 = vperm.xlu0 %84, %v30
    %v86 = vpop.permute.xlu0 %85
    %88 = vset.pattern.permute.xlu0 2
    %89 = vperm.xlu0 %88, %v31
    %v90 = vpop.permute.xlu0 %89
    %v92 = vmul.f32 %v53, %v86
    %v93 = vmul.f32 %v54, %v86
    %v94 = vmul.f32 %v55, %v90
    %v95 = vmul.f32 %v56, %v90
    %100 = vrot.lane.b32.xlu0 %v92, 127
    %v101 = vpop.permute.xlu0 %100
    %102 = vrot.lane.b32.xlu0 %v93, 127
    %v103 = vpop.permute.xlu0 %102
    %104 = vrot.lane.b32.xlu0 %v94, 127
    %v105 = vpop.permute.xlu0 %104
    %106 = vrot.lane.b32.xlu0 %v95, 127
    %v107 = vpop.permute.xlu0 %106
    %vm108 = vcmask 1039360
    %v109 = vsel %vm108, %v101, %v103
    %v110 = vsel %vm108, %v105, %v107
    %v113 = vadd.f32 %v82, %v109
    %v114 = vadd.f32 %v83, %v110
    %116 = vset.pattern.permute.xlu0 0
    %117 = vperm.xlu0 %116, %v32
    %v118 = vpop.permute.xlu0 %117
    %121 = vset.pattern.permute.xlu0 0
    %122 = vperm.xlu0 %121, %v33
    %v123 = vpop.permute.xlu0 %122
    %v125 = vadd.f32 %v113, %v118
    %v126 = vadd.f32 %v114, %v123
    %v127 = vld [vmem:[%s1] sm:$0xff]
    %v128 = vld [vmem:[%s1 + $0x8] sm:$0xff]
    %130 = vset.pattern.permute.xlu0 0
    %131 = vperm.xlu0 %130, %v127
    %v132 = vpop.permute.xlu0 %131
    %135 = vset.pattern.permute.xlu0 0
    %136 = vperm.xlu0 %135, %v128
    %v137 = vpop.permute.xlu0 %136
    %v139 = vmul.f32 %v132, %v125
    %v140 = vmul.f32 %v137, %v126
    %v141 = vld [vmem:[%s2] sm:$0xff]
    %v142 = vld [vmem:[%s2 + $0x8] sm:$0xff]
    %144 = vset.pattern.permute.xlu0 0
    %145 = vperm.xlu0 %144, %v141
    %v146 = vpop.permute.xlu0 %145
    %149 = vset.pattern.permute.xlu0 0
    %150 = vperm.xlu0 %149, %v142
    %v151 = vpop.permute.xlu0 %150
    %v153 = vadd.f32 %v139, %v146
    %v154 = vadd.f32 %v140, %v151
    %v155 = vsel %vm52, %v153, 0.0
    %v156 = vsel %vm52, %v154, 0.0
    %v157 = vadd.f32 %v155, %v156
    %158 = vadd.xlane.f32.xlu0 %v157
    %v159 = vpop.xlane.xlu0 %158
    %v160 = vrot.slane %v159, 4
    %v161 = vadd.f32 %v159, %v160
    %v162 = vrot.slane %v161, 2
    %v163 = vadd.f32 %v161, %v162
    %v164 = vrot.slane %v163, 1
    %v165 = vadd.f32 %v163, %v164
    %s166 = vtos %v165
    %s167 = smul.f32 %s166, 0.00390625
    %v168 = vstv %s167
    %v169 = vsub.f32 %v155, %v168
    %v170 = vsub.f32 %v156, %v168
    %v171 = vsel %vm52, %v169, 0.0
    %v172 = vsel %vm52, %v170, 0.0
    %v173 = vmul.f32 %v171, %v171
    %v174 = vmul.f32 %v172, %v172
    %v175 = vadd.f32 %v173, %v174
    %176 = vadd.xlane.f32.xlu0 %v175
    %v177 = vpop.xlane.xlu0 %176
    %v178 = vrot.slane %v177, 4
    %v179 = vadd.f32 %v177, %v178
    %v180 = vrot.slane %v179, 2
    %v181 = vadd.f32 %v179, %v180
    %v182 = vrot.slane %v181, 1
    %v183 = vadd.f32 %v181, %v182
    %s184 = vtos %v183
    %s185 = smul.f32 %s184, 0.00390625
    %s186 = sadd.f32 %s185, 1e-12
    %v187 = vstv %s186
    %v188 = vrsqrt.pop %v187
    %v189 = vmul.f32 %v188, %v187
    %v190 = vmul.f32 %v189, %v188
    %v191 = vmul.f32 0.5, %v190
    %v192 = vsub.f32 1.5, %v191
    %v193 = vmul.f32 %v188, %v192
    %vm194 = vweird.f32 %v187
    %vm195 = vweird.f32 %v188
    %vm196 = vmor %vm194, %vm195
    %v197 = vsel %vm196, %v188, %v193
    %s198 = vtos %v197
    %vm199 = vcmask 130048
    %v201 = vsel %vm199, %v34, 0
    %v204 = vsel %vm199, %v35, 0
    %v207 = vsel %vm199, %v36, 0
    %v210 = vsel %vm199, %v37, 0
    %v213 = vsel %vm199, %v38, 0
    %v216 = vsel %vm199, %v39, 0
    %v219 = vsel %vm199, %v40, 0
    %v222 = vsel %vm199, %v41, 0
    %224 = vmatpush.msra.mxu0 0.0
    %225 = vmatpush.msra.mxu0 0.0
    %226 = vmatpush.msra.mxu0 0.0
    %227 = vmatpush.msra.mxu0 0.0
    %228 = vmatpush.msra.mxu0 0.0
    %229 = vmatpush.msra.mxu0 0.0
    %230 = vmatpush.msra.mxu0 0.0
    %231 = vmatpush.msra.mxu0 0.0
    %232 = vmatpush.msra.mxu0 0.0
    %233 = vmatpush.msra.mxu0 0.0
    %234 = vmatpush.msra.mxu0 0.0
    %235 = vmatpush.msra.mxu0 0.0
    %236 = vmatpush.msra.mxu0 0.0
    %237 = vmatpush.msra.mxu0 0.0
    %238 = vmatpush.msra.mxu0 %v172
    %239 = vmatpush.msra.mxu0 %v171
    %240 = vmatmul.f32.gmra.mxu0 %v201
    %v241 = vpop.f32.mrf.mxu0
    %v242 = vadd.f32 0.0, %v241
    %243 = vmatmul.f32.gmra.mxu0 %v204
    %v244 = vpop.f32.mrf.mxu0
    %v245 = vadd.f32 0.0, %v244
    %246 = vmatmul.f32.gmra.mxu0 %v207
    %v247 = vpop.f32.mrf.mxu0
    %v248 = vadd.f32 0.0, %v247
    %249 = vmatmul.f32.gmra.mxu0 %v210
    %v250 = vpop.f32.mrf.mxu0
    %v251 = vadd.f32 0.0, %v250
    %252 = vmatmul.f32.gmra.mxu0 %v213
    %v253 = vpop.f32.mrf.mxu0
    %v254 = vadd.f32 0.0, %v253
    %255 = vmatmul.f32.gmra.mxu0 %v216
    %v256 = vpop.f32.mrf.mxu0
    %v257 = vadd.f32 0.0, %v256
    %258 = vmatmul.f32.gmra.mxu0 %v219
    %v259 = vpop.f32.mrf.mxu0
    %v260 = vadd.f32 0.0, %v259
    %261 = vmatmul.f32.gmra.mxu0 %v222
    %v262 = vpop.f32.mrf.mxu0
    %v263 = vadd.f32 0.0, %v262
    %264 = vdwg.mxu0
    %v265 = vstv %s198
    %v266 = vmul.f32 %v242, %v265
    %v267 = vmul.f32 %v245, %v265
    %v268 = vmul.f32 %v248, %v265
    %v269 = vmul.f32 %v251, %v265
    %v270 = vmul.f32 %v254, %v265
    %v271 = vmul.f32 %v257, %v265
    %v272 = vmul.f32 %v260, %v265
    %v273 = vmul.f32 %v263, %v265
    %275 = vset.pattern.permute.xlu0 0
    %276 = vperm.xlu0 %275, %v42
    %v277 = vpop.permute.xlu0 %276
    %280 = vset.pattern.permute.xlu0 0
    %281 = vperm.xlu0 %280, %v43
    %v282 = vpop.permute.xlu0 %281
    %285 = vset.pattern.permute.xlu0 0
    %286 = vperm.xlu0 %285, %v44
    %v287 = vpop.permute.xlu0 %286
    %290 = vset.pattern.permute.xlu0 0
    %291 = vperm.xlu0 %290, %v45
    %v292 = vpop.permute.xlu0 %291
    %295 = vset.pattern.permute.xlu0 0
    %296 = vperm.xlu0 %295, %v46
    %v297 = vpop.permute.xlu0 %296
    %300 = vset.pattern.permute.xlu0 0
    %301 = vperm.xlu0 %300, %v47
    %v302 = vpop.permute.xlu0 %301
    %305 = vset.pattern.permute.xlu0 0
    %306 = vperm.xlu0 %305, %v48
    %v307 = vpop.permute.xlu0 %306
    %310 = vset.pattern.permute.xlu0 0
    %311 = vperm.xlu0 %310, %v49
    %v312 = vpop.permute.xlu0 %311
    %v314 = vadd.f32 %v266, %v277
    %v315 = vadd.f32 %v267, %v282
    %v316 = vadd.f32 %v268, %v287
    %v317 = vadd.f32 %v269, %v292
    %v318 = vadd.f32 %v270, %v297
    %v319 = vadd.f32 %v271, %v302
    %v320 = vadd.f32 %v272, %v307
    %v321 = vadd.f32 %v273, %v312
    %322 = vst [vmem:[#allocation2] sm:$0xff] %v314
    %323 = vst [vmem:[#allocation2 + $0x8] sm:$0xff] %v315
    %324 = vst [vmem:[#allocation2 + $0x10] sm:$0xff] %v316
    %325 = vst [vmem:[#allocation2 + $0x18] sm:$0xff] %v317
    %326 = vst [vmem:[#allocation4] sm:$0xff] %v318
    %327 = vst [vmem:[#allocation4 + $0x8] sm:$0xff] %v319
    %328 = vst [vmem:[#allocation4 + $0x10] sm:$0xff] %v320
    %329 = vst [vmem:[#allocation4 + $0x18] sm:$0xff] %v321
    %s330 = scalar_lea.vmem %s0, 64
    %v331 = vld [vmem:[%s330] sm:$0xff]
    %v332 = vld [vmem:[%s330 + $0x8] sm:$0xff]
    %v333 = vld [vmem:[%s330 + $0x10] sm:$0xff]
    %v334 = vld [vmem:[%s330 + $0x18] sm:$0xff]
    %v335 = vmul.f32 %v331, %v60
    %v336 = vmul.f32 %v333, %v65
    %s337 = scalar_lea.vmem %s0, 96
    %v338 = vld [vmem:[%s337] sm:$0xff]
    %v339 = vld [vmem:[%s337 + $0x10] sm:$0xff]
    %v340 = vmul.f32 %v338, %v74
    %v341 = vmul.f32 %v339, %v78
    %v342 = vadd.f32 %v335, %v340
    %v343 = vadd.f32 %v336, %v341
    %v344 = vmul.f32 %v331, %v86
    %v345 = vmul.f32 %v332, %v86
    %v346 = vmul.f32 %v333, %v90
    %v347 = vmul.f32 %v334, %v90
    %352 = vrot.lane.b32.xlu0 %v344, 127
    %v353 = vpop.permute.xlu0 %352
    %354 = vrot.lane.b32.xlu0 %v345, 127
    %v355 = vpop.permute.xlu0 %354
    %356 = vrot.lane.b32.xlu0 %v346, 127
    %v357 = vpop.permute.xlu0 %356
    %358 = vrot.lane.b32.xlu0 %v347, 127
    %v359 = vpop.permute.xlu0 %358
    %v360 = vsel %vm108, %v353, %v355
    %v361 = vsel %vm108, %v357, %v359
    %v364 = vadd.f32 %v342, %v360
    %v365 = vadd.f32 %v343, %v361
    %v366 = vadd.f32 %v364, %v118
    %v367 = vadd.f32 %v365, %v123
    %s368 = scalar_lea.vmem %s1, 16
    %v369 = vld [vmem:[%s368] sm:$0xff]
    %v370 = vld [vmem:[%s368 + $0x8] sm:$0xff]
    %372 = vset.pattern.permute.xlu0 0
    %373 = vperm.xlu0 %372, %v369
    %v374 = vpop.permute.xlu0 %373
    %377 = vset.pattern.permute.xlu0 0
    %378 = vperm.xlu0 %377, %v370
    %v379 = vpop.permute.xlu0 %378
    %v381 = vmul.f32 %v374, %v366
    %v382 = vmul.f32 %v379, %v367
    %s383 = scalar_lea.vmem %s2, 16
    %v384 = vld [vmem:[%s383] sm:$0xff]
    %v385 = vld [vmem:[%s383 + $0x8] sm:$0xff]
    %387 = vset.pattern.permute.xlu0 0
    %388 = vperm.xlu0 %387, %v384
    %v389 = vpop.permute.xlu0 %388
    %392 = vset.pattern.permute.xlu0 0
    %393 = vperm.xlu0 %392, %v385
    %v394 = vpop.permute.xlu0 %393
    %v396 = vadd.f32 %v381, %v389
    %v397 = vadd.f32 %v382, %v394
    %v398 = vsel %vm52, %v396, 0.0
    %v399 = vsel %vm52, %v397, 0.0
    %v400 = vadd.f32 %v398, %v399
    %401 = vadd.xlane.f32.xlu0 %v400
    %v402 = vpop.xlane.xlu0 %401
    %v403 = vrot.slane %v402, 4
    %v404 = vadd.f32 %v402, %v403
    %v405 = vrot.slane %v404, 2
    %v406 = vadd.f32 %v404, %v405
    %v407 = vrot.slane %v406, 1
    %v408 = vadd.f32 %v406, %v407
    %s409 = vtos %v408
    %s410 = smul.f32 %s409, 0.00390625
    %v411 = vstv %s410
    %v412 = vsub.f32 %v398, %v411
    %v413 = vsub.f32 %v399, %v411
    %v414 = vsel %vm52, %v412, 0.0
    %v415 = vsel %vm52, %v413, 0.0
    %v416 = vmul.f32 %v414, %v414
    %v417 = vmul.f32 %v415, %v415
    %v418 = vadd.f32 %v416, %v417
    %419 = vadd.xlane.f32.xlu0 %v418
    %v420 = vpop.xlane.xlu0 %419
    %v421 = vrot.slane %v420, 4
    %v422 = vadd.f32 %v420, %v421
    %v423 = vrot.slane %v422, 2
    %v424 = vadd.f32 %v422, %v423
    %v425 = vrot.slane %v424, 1
    %v426 = vadd.f32 %v424, %v425
    %s427 = vtos %v426
    %s428 = smul.f32 %s427, 0.00390625
    %s429 = sadd.f32 %s428, 1e-12
    %v430 = vstv %s429
    %v431 = vrsqrt.pop %v430
    %v432 = vmul.f32 %v431, %v430
    %v433 = vmul.f32 %v432, %v431
    %v434 = vmul.f32 0.5, %v433
    %v435 = vsub.f32 1.5, %v434
    %v436 = vmul.f32 %v431, %v435
    %vm437 = vweird.f32 %v430
    %vm438 = vweird.f32 %v431
    %vm439 = vmor %vm437, %vm438
    %v440 = vsel %vm439, %v431, %v436
    %s441 = vtos %v440
    %442 = vmatpush.msra.mxu0 0.0
    %443 = vmatpush.msra.mxu0 0.0
    %444 = vmatpush.msra.mxu0 0.0
    %445 = vmatpush.msra.mxu0 0.0
    %446 = vmatpush.msra.mxu0 0.0
    %447 = vmatpush.msra.mxu0 0.0
    %448 = vmatpush.msra.mxu0 0.0
    %449 = vmatpush.msra.mxu0 0.0
    %450 = vmatpush.msra.mxu0 0.0
    %451 = vmatpush.msra.mxu0 0.0
    %452 = vmatpush.msra.mxu0 0.0
    %453 = vmatpush.msra.mxu0 0.0
    %454 = vmatpush.msra.mxu0 0.0
    %455 = vmatpush.msra.mxu0 0.0
    %456 = vmatpush.msra.mxu0 %v415
    %457 = vmatpush.msra.mxu0 %v414
    %458 = vmatmul.f32.gmra.mxu0 %v201
    %v459 = vpop.f32.mrf.mxu0
    %v460 = vadd.f32 0.0, %v459
    %461 = vmatmul.f32.gmra.mxu0 %v204
    %v462 = vpop.f32.mrf.mxu0
    %v463 = vadd.f32 0.0, %v462
    %464 = vmatmul.f32.gmra.mxu0 %v207
    %v465 = vpop.f32.mrf.mxu0
    %v466 = vadd.f32 0.0, %v465
    %467 = vmatmul.f32.gmra.mxu0 %v210
    %v468 = vpop.f32.mrf.mxu0
    %v469 = vadd.f32 0.0, %v468
    %470 = vmatmul.f32.gmra.mxu0 %v213
    %v471 = vpop.f32.mrf.mxu0
    %v472 = vadd.f32 0.0, %v471
    %473 = vmatmul.f32.gmra.mxu0 %v216
    %v474 = vpop.f32.mrf.mxu0
    %v475 = vadd.f32 0.0, %v474
    %476 = vmatmul.f32.gmra.mxu0 %v219
    %v477 = vpop.f32.mrf.mxu0
    %v478 = vadd.f32 0.0, %v477
    %479 = vmatmul.f32.gmra.mxu0 %v222
    %v480 = vpop.f32.mrf.mxu0
    %v481 = vadd.f32 0.0, %v480
    %482 = vdwg.mxu0
    %v483 = vstv %s441
    %v484 = vmul.f32 %v460, %v483
    %v485 = vmul.f32 %v463, %v483
    %v486 = vmul.f32 %v466, %v483
    %v487 = vmul.f32 %v469, %v483
    %v488 = vmul.f32 %v472, %v483
    %v489 = vmul.f32 %v475, %v483
    %v490 = vmul.f32 %v478, %v483
    %v491 = vmul.f32 %v481, %v483
    %v492 = vadd.f32 %v484, %v277
    %v493 = vadd.f32 %v485, %v282
    %v494 = vadd.f32 %v486, %v287
    %v495 = vadd.f32 %v487, %v292
    %v496 = vadd.f32 %v488, %v297
    %v497 = vadd.f32 %v489, %v302
    %v498 = vadd.f32 %v490, %v307
    %v499 = vadd.f32 %v491, %v312
    %s500 = scalar_lea.vmem [#allocation2], 32
    %501 = vst [vmem:[%s500] sm:$0xff] %v492
    %502 = vst [vmem:[%s500 + $0x8] sm:$0xff] %v493
    %503 = vst [vmem:[%s500 + $0x10] sm:$0xff] %v494
    %504 = vst [vmem:[%s500 + $0x18] sm:$0xff] %v495
    %s505 = scalar_lea.vmem [#allocation4], 32
    %506 = vst [vmem:[%s505] sm:$0xff] %v496
    %507 = vst [vmem:[%s505 + $0x8] sm:$0xff] %v497
    %508 = vst [vmem:[%s505 + $0x10] sm:$0xff] %v498
    %509 = vst [vmem:[%s505 + $0x18] sm:$0xff] %v499
    // Predicated region
    $region30: #{tpu_custom_call.1} parent=1 // pred_check
      _
    $region31: #{tpu_custom_call.1} parent=1 // pred_check_branch
      %511 = sbr.rel (0) target = $region33
    $region32: #{tpu_custom_call.1} parent=1 // pred_region
      %513 = vsyncadd [#allocation3], 0
      %s514 = sshll.u32 [#allocation2], 4
      %s515 = int_to_ptr.vmem [resolvable:$true] %s514
      %s516 = sshll.u32 %s7, 4
      %s517 = int_to_ptr.hbm [resolvable:$true] %s516
      %522 = dma.vmem_to_hbm [thread:$0]  %s515, 1024, %s517, [#allocation3], 128, 128, 8
    $region33: #{tpu_custom_call.1} parent=1 // pred_fallthru
      _
    // Predicated region
    $region34: #{tpu_custom_call.1} parent=1 // pred_check
      _
    $region35: #{tpu_custom_call.1} parent=1 // pred_check_branch
      %524 = sbr.rel (0) target = $region37
    $region36: #{tpu_custom_call.1} parent=1 // pred_region
      %526 = vsyncadd [#allocation5], 0
      %s527 = sshll.u32 [#allocation4], 4
      %s528 = int_to_ptr.vmem [resolvable:$true] %s527
      %s529 = sshll.u32 %s8, 4
      %s530 = int_to_ptr.hbm [resolvable:$true] %s529
      %535 = dma.vmem_to_hbm [thread:$0]  %s528, 1024, %s530, [#allocation5], 128, 128, 8
    $region37: #{tpu_custom_call.1} parent=1 // pred_fallthru
      _
    // Predicated region
    $region38: #{tpu_custom_call.1} parent=1 // pred_check
      _
    $region39: #{tpu_custom_call.1} parent=1 // pred_check_branch
      %537 = sbr.rel (0) target = $region41
    $region40: #{tpu_custom_call.1} parent=1 // pred_region
      %539 = dma.done [#allocation3], 1024
    $region41: #{tpu_custom_call.1} parent=1 // pred_fallthru
      _
    // Predicated region
    $region42: #{tpu_custom_call.1} parent=1 // pred_check
      _
    $region43: #{tpu_custom_call.1} parent=1 // pred_check_branch
      %541 = sbr.rel (0) target = $region45
    $region44: #{tpu_custom_call.1} parent=1 // pred_region
      %543 = dma.done [#allocation5], 1024
    $region45: #{tpu_custom_call.1} parent=1 // pred_fallthru
      _
    %544 = vsyncpa [#allocation3], 1
    %545 = vsyncpa [#allocation5], 1

</llo_original>
